<compile_context>
chip_gen: v7x
topology: tpu7x:2x2x1
jax: 0.10.0
libtpu: 0.0.40
codegen_flags: <defaults>
</compile_context>

<pallas_src>
import math

import jax
import jax.numpy as jnp
from jax.experimental import pallas as pl
from jax.experimental.pallas import tpu as pltpu


def _drop_path_kernel(scale_ref, x_ref, o_ref):
    # scale_ref: (TB, 1) f32 with value 0 or 1/keep_prob per sample;
    # broadcasts across the lane (feature) axis of the (TB, TILE_F) x block.
    o_ref[...] = (x_ref[...] * scale_ref[...]).astype(o_ref.dtype)


def drop_path(x, drop_prob: float = 0.0, training: bool = False, *, key=None):
    if drop_prob == 0.0 or not training:
        return x
    if key is None:
        # TODO(synk): callers should supply a fresh PRNG key per step; a fixed
        # default key repeats the same drop pattern every call.
        key = jax.random.PRNGKey(0)

    keep_prob = 1.0 - drop_prob
    orig_shape = x.shape
    n = orig_shape[0]
    feat = int(math.prod(orig_shape[1:]))  # 1 for 1-D inputs

    # Per-sample Bernoulli(keep_prob) mask, matching torch's floor(keep_prob + U[0,1)).
    u = jax.random.uniform(key, (n,), dtype=jnp.float32)
    keep = jnp.floor(keep_prob + u)                     # 0.0 or 1.0 (f32)
    scale = (keep / keep_prob).reshape(n, 1)            # 0 or 1/keep_prob, f32

    # Lane-dense layout: all non-batch dims flattened onto the lane axis.
    x2 = x.reshape(n, feat)
    itemsize = x2.dtype.itemsize

    # Batch tile: multiple of 8 (sublane) unless the whole batch is smaller.
    TB = n if n < 8 else 8
    # Feature tile: multiple of 128 lanes, ~2 MiB per block (double-buffered
    # input + output stays far below the scoped VMEM limit on v5e/v6e/v7x).
    target_block_bytes = 2 * 1024 * 1024
    max_tile_f = max(128, (target_block_bytes // (TB * itemsize)) // 128 * 128)
    TILE_F = feat if feat <= max_tile_f else max_tile_f

    grid = (pl.cdiv(n, TB), pl.cdiv(feat, TILE_F))

    out = pl.pallas_call(
        _drop_path_kernel,
        out_shape=jax.ShapeDtypeStruct((n, feat), x2.dtype),
        grid=grid,
        in_specs=[
            pl.BlockSpec((TB, 1), lambda b, f: (b, 0)),        # per-sample scale
            pl.BlockSpec((TB, TILE_F), lambda b, f: (b, f)),   # activations
        ],
        out_specs=pl.BlockSpec((TB, TILE_F), lambda b, f: (b, f)),
        compiler_params=pltpu.CompilerParams(
            dimension_semantics=("parallel", "parallel")),
        cost_estimate=pl.CostEstimate(
            flops=x2.size,
            transcendentals=0,
            bytes_accessed=2 * x2.size * itemsize + scale.size * 4),
    )(scale, x2)
    return out.reshape(orig_shape)


class DropPath:
    """JAX/Pallas port of flabplatform DropPath (no learnable parameters)."""

    def __init__(self, drop_prob: float = 0.1):
        self.drop_prob = drop_prob
        self.training = True

    def __call__(self, x, key=None):
        return drop_path(x, self.drop_prob, self.training, key=key)


if __name__ == "__main__":
    key = jax.random.PRNGKey(0)
    kx, kmask = jax.random.split(key)

    # NCHW input, small shape consistent with a conv feature map.
    x = jax.random.normal(kx, (2, 4, 16, 16), dtype=jnp.float32)

    mod = DropPath(drop_prob=0.1)
    y = jax.block_until_ready(mod(x, key=kmask))

    # Pure-JAX reference with identical RNG draw (same semantics as torch).
    keep_prob = 1.0 - 0.1
    u = jax.random.uniform(kmask, (2,), dtype=jnp.float32)
    mask = jnp.floor(keep_prob + u).reshape(2, 1, 1, 1)
    ref = x / keep_prob * mask
    assert y.shape == x.shape and y.dtype == x.dtype
    assert jnp.allclose(y, ref, atol=1e-6, rtol=1e-6)

    # Eval path and drop_prob=0 path return the input unchanged.
    mod.training = False
    assert jnp.array_equal(jax.block_until_ready(mod(x, key=kmask)), x)
    mod.training = True
    mod.drop_prob = 0.0
    assert jnp.array_equal(jax.block_until_ready(mod(x, key=kmask)), x)

    print("KERNEL_OK")
</pallas_src>

<mosaic_0001>
module attributes {stable_mosaic.version = 11 : i64} {
  func.func @_drop_path_kernel(%arg0: i32, %arg1: i32, %arg2: memref<2x1xf32, #tpu.memory_space<vmem>>, %arg3: memref<2x1024xf32, #tpu.memory_space<vmem>>, %arg4: memref<2x1024xf32, #tpu.memory_space<vmem>>) attributes {dimension_semantics = [#tpu.dimension_semantics<parallel>, #tpu.dimension_semantics<parallel>], iteration_bounds = array<i64: 1, 1>, scalar_prefetch = 0 : i64, scratch_operands = 0 : i64, tpu.core_type = #tpu.core_type<tc>, window_params = [{transform_indices = @transform_0, window_bounds = array<i64: 2, 1>}, {transform_indices = @transform_1, window_bounds = array<i64: 2, 1024>}, {transform_indices = @transform_2, window_bounds = array<i64: 2, 1024>}]} {
    %c0 = arith.constant 0 : index
    %c0_0 = arith.constant 0 : index
    %0 = vector.load %arg3[%c0, %c0_0] : memref<2x1024xf32, #tpu.memory_space<vmem>>, vector<2x1024xf32>
    %c0_1 = arith.constant 0 : index
    %c0_2 = arith.constant 0 : index
    %1 = vector.load %arg2[%c0_1, %c0_2] : memref<2x1xf32, #tpu.memory_space<vmem>>, vector<2x1xf32>
    %2 = vector.broadcast %1 : vector<2x1xf32> to vector<2x1024xf32>
    %3 = arith.mulf %0, %2 : vector<2x1024xf32>
    %c0_3 = arith.constant 0 : index
    %c0_4 = arith.constant 0 : index
    %4 = vector.load %arg4[%c0_3, %c0_4] : memref<2x1024xf32, #tpu.memory_space<vmem>>, vector<2x1024xf32>
    tpu.vector_store %arg4[%c0_3, %c0_4], %3 {strides = array<i32>} : memref<2x1024xf32, #tpu.memory_space<vmem>>, vector<2x1024xf32>,
    return
  }
  func.func @transform_0(%arg0: i32, %arg1: i32) -> (i32, i32) {
    %c0_i32 = arith.constant 0 : i32
    %c0_i32_0 = arith.constant 0 : i32
    return %arg0, %c0_i32 : i32, i32
  }
  func.func @transform_1(%arg0: i32, %arg1: i32) -> (i32, i32) {
    %c0_i32 = arith.constant 0 : i32
    return %arg0, %arg1 : i32, i32
  }
  func.func @transform_2(%arg0: i32, %arg1: i32) -> (i32, i32) {
    %c0_i32 = arith.constant 0 : i32
    return %arg0, %arg1 : i32, i32
  }
}

</mosaic_0001>

<llo_original>
// kernel: tpu_custom_call.1
$region0: #{tpu_custom_call.1}
  #allocation0 [shape = 'u32[]', space=smem, size = 0x4, offset = 0x4, fixed_abs, tag = 'smem constant byte address 0x4 - core index']
  #allocation1 [shape = 'u32[144,128]{1,0:T(1,128)}', space=vmem, size = 0x12000, scoped, tag = 'internal scratch']
  %s0 = inlined_call_operand.vmem [shape: f32[2,1], index: 0, kind: input, shape index: {}]
  %s1 = inlined_call_operand.hbm [shape: f32[2,1024], index: 1, kind: input, shape index: {}]
  %s2 = inlined_call_operand.hbm [shape: f32[2,1024], index: 2, kind: output, shape index: {}]
  %s3 = sld [smem:[#allocation0]]
  $region22: #{tpu_custom_call.1} parent=0
    _
  %s5 = ssub.s32 1, %s3
  %s6 = scalar_select 0, %s5, %s3
  $region1: #{tpu_custom_call.1} parent=0
    #allocation2 [shape = 'u8[8192]{0}', space=vmem, size = 0x2000, scoped, tag = 'input window, operand 1, single buffered']
    #allocation3 [shape = 's32[1]{0}', space=sflag, size = 0x4, scoped, tag = 'scoped memory for tpu_custom_call.1']
    #allocation4 [shape = 's32[1]{0}', space=sflag, size = 0x4, scoped, tag = 'scoped memory for tpu_custom_call.1']
    #allocation5 [shape = 'u8[8192]{0}', space=vmem, size = 0x2000, scoped, tag = 'output window, operand 0, single buffered']
    %7 = vsyncpa [#allocation3], 0
    %8 = vsyncpa [#allocation4], 0
    // Predicated region
    $region2: #{tpu_custom_call.1} parent=1 // pred_check
      _
    $region3: #{tpu_custom_call.1} parent=1 // pred_check_branch
      %10 = sbr.rel (0) target = $region5
    $region4: #{tpu_custom_call.1} parent=1 // pred_region
      _
    $region5: #{tpu_custom_call.1} parent=1 // pred_fallthru
      _
    // Predicated region
    $region6: #{tpu_custom_call.1} parent=1 // pred_check
      _
    $region7: #{tpu_custom_call.1} parent=1 // pred_check_branch
      %12 = sbr.rel (0) target = $region9
    $region8: #{tpu_custom_call.1} parent=1 // pred_region
      %s14 = ssub.s32 256, 256
      %15 = vsyncadd [#allocation3], %s14
      %s17 = sshll.u32 [#allocation2], 4
      %s18 = int_to_ptr.vmem [resolvable:$true] %s17
      %20 = dma.hbm_to_vmem [thread:$0]  %s1, 256, %s18, [#allocation3]
    $region9: #{tpu_custom_call.1} parent=1 // pred_fallthru
      _
    // Predicated region
    $region10: #{tpu_custom_call.1} parent=1 // pred_check
      _
    $region11: #{tpu_custom_call.1} parent=1 // pred_check_branch
      %22 = sbr.rel (0) target = $region13
    $region12: #{tpu_custom_call.1} parent=1 // pred_region
      %23 = dma.done [#allocation3], 256
    $region13: #{tpu_custom_call.1} parent=1 // pred_fallthru
      _
    %v24 = vld [vmem:[#allocation2] sm:$0xff]
    %v25 = vld [vmem:[#allocation2 + $0x8] sm:$0xff]
    %v26 = vld [vmem:[%s0] sm:$0x3]
    %28 = vset.pattern.permute.xlu0 0
    %29 = vperm.xlu0 %28, %v26
    %v30 = vpop.permute.xlu0 %29
    %v32 = vunpack.c.l.s4 269488144
    %v33 = vunpack.c.0.s8 %v32
    %v34 = vlaneseq
    %v35 = vshrl.u32 %v34, 7
    %v36 = vsub.s32 %v33, %v35
    %v37 = vrot.slane %v30, %v36
    %v39 = vmul.f32 %v24, %v37
    %v40 = vmul.f32 %v25, %v37
    %41 = vst [vmem:[#allocation5] sm:$0xff] %v39
    %42 = vst [vmem:[#allocation5 + $0x8] sm:$0xff] %v40
    // Predicated region
    $region14: #{tpu_custom_call.1} parent=1 // pred_check
      _
    $region15: #{tpu_custom_call.1} parent=1 // pred_check_branch
      %44 = sbr.rel (0) target = $region17
    $region16: #{tpu_custom_call.1} parent=1 // pred_region
      %s46 = ssub.s32 256, 256
      %47 = vsyncadd [#allocation4], %s46
      %s49 = sshll.u32 [#allocation5], 4
      %s50 = int_to_ptr.vmem [resolvable:$true] %s49
      %52 = dma.vmem_to_hbm [thread:$0]  %s50, 256, %s2, [#allocation4]
    $region17: #{tpu_custom_call.1} parent=1 // pred_fallthru
      _
    // Predicated region
    $region18: #{tpu_custom_call.1} parent=1 // pred_check
      _
    $region19: #{tpu_custom_call.1} parent=1 // pred_check_branch
      %54 = sbr.rel (0) target = $region21
    $region20: #{tpu_custom_call.1} parent=1 // pred_region
      %55 = dma.done [#allocation4], 256
    $region21: #{tpu_custom_call.1} parent=1 // pred_fallthru
      _
    %56 = vsyncpa [#allocation3], 1
    %57 = vsyncpa [#allocation4], 1

</llo_original>
